<compile_context>
chip_gen: v7x
topology: tpu7x:2x2x1
jax: 0.10.0
libtpu: 0.0.40
codegen_flags: <defaults>
</compile_context>

<pallas_src>
import functools

import jax
import jax.numpy as jnp
from jax.experimental import pallas as pl
from jax.experimental.pallas import tpu as pltpu


def _round_up(a: int, b: int) -> int:
    return (a + b - 1) // b * b


def _mlp_kernel(xt_ref, w1_ref, b1_ref, w2_ref, b2_ref, w3_ref, b3_ref, o_ref):
    # Transposed layout (batch lives in the lane dimension):
    #   xt: (D, bn) bf16, w1: (H, D) bf16, w2: (H, H) bf16,
    #   b1/b2/w3: (H, 1) f32, b3: (1, 1) f32, out: (1, bn) f32.
    xt = xt_ref[...]                                              # (D, bn) bf16

    # Layer 1: MXU (bf16 in, f32 accumulate); bias + ReLU on the f32 accumulator.
    h1 = jnp.dot(w1_ref[...], xt, preferred_element_type=jnp.float32)
    h1 = jnp.maximum(h1 + b1_ref[...], 0.0)                       # (H, bn) f32

    # Layer 2: MXU again.
    h2 = jnp.dot(w2_ref[...], h1.astype(jnp.bfloat16),
                 preferred_element_type=jnp.float32)
    h2 = jnp.maximum(h2 + b2_ref[...], 0.0)                       # (H, bn) f32

    # Layer 3: single output unit -> skip the MXU. VPU multiply by the (H,1)
    # weight column, sublane (XLU) reduction; result is already lane-dense.
    logits = jnp.sum(h2 * w3_ref[...], axis=0, keepdims=True) + b3_ref[...]
    o_ref[...] = jax.nn.sigmoid(logits).astype(o_ref.dtype)       # (1, bn)


@functools.partial(jax.jit, static_argnames=("block_n",))
def discriminator_forward(x, params, block_n=512):
    """Forward pass of DiscriminatorNetwork.

    x: (N, input_dim) float32
    params (torch layout): w1 (H, D), b1 (H,), w2 (H, H), b2 (H,),
                           w3 (1, H), b3 (1,)
    returns: (N, 1) float32 in (0, 1)
    """
    n, d = x.shape
    h = params["w1"].shape[0]

    d_pad = _round_up(d, 128)
    h_pad = _round_up(h, 128)

    # Batch tile: lane-aligned, as big as the VMEM budget allows, but keep the
    # grid at >=2 steps when possible so both v7x TensorCores get work.
    n128 = _round_up(max(n, 1), 128)
    bn = min(block_n, n128)
    if n128 >= 256 and n128 // bn < 2:
        bn = _round_up(n128 // 2, 128)

    def footprint(b):
        return (2 * d_pad * b * 2                              # x tile (bf16, x2 bufs)
                + 2 * b * 4                                    # out tile (f32, x2 bufs)
                + 2 * 2 * (h_pad * d_pad + h_pad * h_pad)      # w1, w2 (bf16, x2 bufs)
                + 3 * h_pad * b * 4                            # h1/h2/prod intermediates
                + 4 * (3 * h_pad + 2))                         # b1, b2, w3, b3 (f32)

    while bn > 128 and footprint(bn) > 40 * 2**20:
        bn -= 128
    n_pad = _round_up(n, bn)
    grid = (n_pad // bn,)

    # Host-side layout plumbing: pad D/H to multiples of 128, transpose x so the
    # batch is the lane-dense last axis, cast the MXU operands to bf16.
    xt = jnp.pad(x, ((0, n_pad - n), (0, d_pad - d))).astype(jnp.bfloat16).T
    w1 = jnp.pad(params["w1"], ((0, h_pad - h), (0, d_pad - d))).astype(jnp.bfloat16)
    w2 = jnp.pad(params["w2"], ((0, h_pad - h), (0, h_pad - h))).astype(jnp.bfloat16)
    b1 = jnp.pad(params["b1"], (0, h_pad - h)).reshape(h_pad, 1).astype(jnp.float32)
    b2 = jnp.pad(params["b2"], (0, h_pad - h)).reshape(h_pad, 1).astype(jnp.float32)
    w3 = jnp.pad(params["w3"], ((0, 0), (0, h_pad - h))).reshape(h_pad, 1).astype(jnp.float32)
    b3 = params["b3"].reshape(1, 1).astype(jnp.float32)

    cost = pl.CostEstimate(
        flops=2 * n_pad * (d_pad * h_pad + h_pad * h_pad + h_pad),
        transcendentals=n_pad,
        bytes_accessed=(xt.size * 2 + w1.size * 2 + w2.size * 2
                        + (b1.size + b2.size + w3.size + b3.size) * 4
                        + n_pad * 4),
    )

    out = pl.pallas_call(
        _mlp_kernel,
        out_shape=jax.ShapeDtypeStruct((1, n_pad), jnp.float32),
        grid_spec=pltpu.PrefetchScalarGridSpec(
            num_scalar_prefetch=0,
            grid=grid,
            in_specs=[
                pl.BlockSpec((d_pad, bn), lambda i: (0, i)),     # x^T tile
                pl.BlockSpec((h_pad, d_pad), lambda i: (0, 0)),  # w1
                pl.BlockSpec((h_pad, 1), lambda i: (0, 0)),      # b1
                pl.BlockSpec((h_pad, h_pad), lambda i: (0, 0)),  # w2
                pl.BlockSpec((h_pad, 1), lambda i: (0, 0)),      # b2
                pl.BlockSpec((h_pad, 1), lambda i: (0, 0)),      # w3 (column)
                pl.BlockSpec((1, 1), lambda i: (0, 0)),          # b3
            ],
            out_specs=pl.BlockSpec((1, bn), lambda i: (0, i)),   # lane-dense output
        ),
        compiler_params=pltpu.CompilerParams(
            dimension_semantics=("parallel",),
            vmem_limit_bytes=min(48 * 2**20, max(32 * 2**20, 2 * footprint(bn))),
        ),
        cost_estimate=cost,
    )(xt, w1, b1, w2, b2, w3, b3)

    return out[0, :n].reshape(n, 1)


def init_params(key, input_dim, hidden_dim=64):
    """torch.nn.Linear-style init; weights stored as (out_features, in_features)."""
    ks = jax.random.split(key, 6)

    def lin(kw, kb, fan_in, fan_out):
        bound = 1.0 / jnp.sqrt(fan_in)
        w = jax.random.uniform(kw, (fan_out, fan_in), jnp.float32, -bound, bound)
        b = jax.random.uniform(kb, (fan_out,), jnp.float32, -bound, bound)
        return w, b

    w1, b1 = lin(ks[0], ks[1], input_dim, hidden_dim)
    w2, b2 = lin(ks[2], ks[3], hidden_dim, hidden_dim)
    w3, b3 = lin(ks[4], ks[5], hidden_dim, 1)
    return {"w1": w1, "b1": b1, "w2": w2, "b2": b2, "w3": w3, "b3": b3}


def _reference_f32(x, p):
    h1 = jnp.maximum(x @ p["w1"].T + p["b1"], 0.0)
    h2 = jnp.maximum(h1 @ p["w2"].T + p["b2"], 0.0)
    return jax.nn.sigmoid(h2 @ p["w3"].T + p["b3"])


def _reference_bf16(x, p):
    # Same precision recipe as the kernel: bf16 MXU inputs, f32 accumulation.
    h1 = jnp.dot(x.astype(jnp.bfloat16), p["w1"].astype(jnp.bfloat16).T,
                 preferred_element_type=jnp.float32)
    h1 = jnp.maximum(h1 + p["b1"], 0.0)
    h2 = jnp.dot(h1.astype(jnp.bfloat16), p["w2"].astype(jnp.bfloat16).T,
                 preferred_element_type=jnp.float32)
    h2 = jnp.maximum(h2 + p["b2"], 0.0)
    return jax.nn.sigmoid(h2 @ p["w3"].T + p["b3"])


if __name__ == "__main__":
    key = jax.random.PRNGKey(0)
    kx, kp = jax.random.split(key)

    batch, input_dim, hidden_dim = 8, 32, 64
    x = jax.random.normal(kx, (batch, input_dim), jnp.float32)
    params = init_params(kp, input_dim, hidden_dim)

    out = jax.block_until_ready(discriminator_forward(x, params))
    assert out.shape == (batch, 1), out.shape

    ref16 = _reference_bf16(x, params)
    ref32 = _reference_f32(x, params)
    assert jnp.allclose(out, ref16, atol=5e-3, rtol=5e-3), "mismatch vs bf16-matched reference"
    assert jnp.allclose(out, ref32, atol=2e-2, rtol=2e-2), "mismatch vs f32 reference"

    print("KERNEL_OK")
</pallas_src>

<mosaic_0001>
module attributes {stable_mosaic.version = 11 : i64} {
  func.func @_mlp_kernel(%arg0: i32, %arg1: memref<128x128xbf16, #tpu.memory_space<vmem>>, %arg2: memref<128x128xbf16, #tpu.memory_space<vmem>>, %arg3: memref<128x1xf32, #tpu.memory_space<vmem>>, %arg4: memref<128x128xbf16, #tpu.memory_space<vmem>>, %arg5: memref<128x1xf32, #tpu.memory_space<vmem>>, %arg6: memref<128x1xf32, #tpu.memory_space<vmem>>, %arg7: memref<1x1xf32, #tpu.memory_space<vmem>>, %arg8: memref<1x128xf32, #tpu.memory_space<vmem>>) attributes {dimension_semantics = [#tpu.dimension_semantics<parallel>], iteration_bounds = array<i64: 1>, scalar_prefetch = 0 : i64, scratch_operands = 0 : i64, tpu.core_type = #tpu.core_type<tc>, window_params = [{transform_indices = @transform_0, window_bounds = array<i64: 128, 128>}, {pipeline_mode = #tpu.pipeline_mode<synchronous>, transform_indices = @transform_1, window_bounds = array<i64: 128, 128>}, {pipeline_mode = #tpu.pipeline_mode<synchronous>, transform_indices = @transform_2, window_bounds = array<i64: 128, 1>}, {pipeline_mode = #tpu.pipeline_mode<synchronous>, transform_indices = @transform_3, window_bounds = array<i64: 128, 128>}, {pipeline_mode = #tpu.pipeline_mode<synchronous>, transform_indices = @transform_4, window_bounds = array<i64: 128, 1>}, {pipeline_mode = #tpu.pipeline_mode<synchronous>, transform_indices = @transform_5, window_bounds = array<i64: 128, 1>}, {pipeline_mode = #tpu.pipeline_mode<synchronous>, transform_indices = @transform_6, window_bounds = array<i64: 1, 1>}, {transform_indices = @transform_7, window_bounds = array<i64: 1, 128>}]} {
    %c0 = arith.constant 0 : index
    %c0_0 = arith.constant 0 : index
    %0 = vector.load %arg1[%c0, %c0_0] : memref<128x128xbf16, #tpu.memory_space<vmem>>, vector<128x128xbf16>
    %c0_1 = arith.constant 0 : index
    %c0_2 = arith.constant 0 : index
    %1 = vector.load %arg2[%c0_1, %c0_2] : memref<128x128xbf16, #tpu.memory_space<vmem>>, vector<128x128xbf16>
    %cst = arith.constant dense<0.000000e+00> : vector<128x128xf32>
    %2 = tpu.matmul %1, %0, %cst {dimension_numbers = #tpu.dot_dimension_numbers<[1], [0], [0], [1], [0, 0, 1, 1], [], []>} : vector<128x128xbf16>, vector<128x128xbf16>, vector<128x128xf32> -> vector<128x128xf32>
    %c0_3 = arith.constant 0 : index
    %c0_4 = arith.constant 0 : index
    %3 = vector.load %arg3[%c0_3, %c0_4] : memref<128x1xf32, #tpu.memory_space<vmem>>, vector<128x1xf32>
    %4 = vector.broadcast %3 : vector<128x1xf32> to vector<128x128xf32>
    %5 = arith.addf %2, %4 : vector<128x128xf32>
    %cst_5 = arith.constant 0.000000e+00 : f32
    %6 = vector.broadcast %cst_5 : f32 to vector<128x128xf32>
    %7 = arith.maximumf %5, %6 : vector<128x128xf32>
    %c0_6 = arith.constant 0 : index
    %c0_7 = arith.constant 0 : index
    %8 = vector.load %arg4[%c0_6, %c0_7] : memref<128x128xbf16, #tpu.memory_space<vmem>>, vector<128x128xbf16>
    %9 = arith.truncf %7 : vector<128x128xf32> to vector<128x128xbf16>
    %cst_8 = arith.constant dense<0.000000e+00> : vector<128x128xf32>
    %10 = tpu.matmul %8, %9, %cst_8 {dimension_numbers = #tpu.dot_dimension_numbers<[1], [0], [0], [1], [0, 0, 1, 1], [], []>} : vector<128x128xbf16>, vector<128x128xbf16>, vector<128x128xf32> -> vector<128x128xf32>
    %c0_9 = arith.constant 0 : index
    %c0_10 = arith.constant 0 : index
    %11 = vector.load %arg5[%c0_9, %c0_10] : memref<128x1xf32, #tpu.memory_space<vmem>>, vector<128x1xf32>
    %12 = vector.broadcast %11 : vector<128x1xf32> to vector<128x128xf32>
    %13 = arith.addf %10, %12 : vector<128x128xf32>
    %cst_11 = arith.constant 0.000000e+00 : f32
    %14 = vector.broadcast %cst_11 : f32 to vector<128x128xf32>
    %15 = arith.maximumf %13, %14 : vector<128x128xf32>
    %c0_12 = arith.constant 0 : index
    %c0_13 = arith.constant 0 : index
    %16 = vector.load %arg6[%c0_12, %c0_13] : memref<128x1xf32, #tpu.memory_space<vmem>>, vector<128x1xf32>
    %17 = vector.broadcast %16 : vector<128x1xf32> to vector<128x128xf32>
    %18 = arith.mulf %15, %17 : vector<128x128xf32>
    %cst_14 = arith.constant dense<0.000000e+00> : vector<128xf32>
    %19 = vector.multi_reduction <add>, %18, %cst_14 [0] : vector<128x128xf32> to vector<128xf32>
    %20 = vector.shape_cast %19 : vector<128xf32> to vector<1x128xf32>
    %c0_15 = arith.constant 0 : index
    %c0_16 = arith.constant 0 : index
    %21 = vector.load %arg7[%c0_15, %c0_16] : memref<1x1xf32, #tpu.memory_space<vmem>>, vector<1x1xf32>
    %22 = vector.broadcast %21 : vector<1x1xf32> to vector<1x128xf32>
    %23 = arith.addf %20, %22 : vector<1x128xf32>
    %24 = arith.negf %23 : vector<1x128xf32>
    %25 = math.exp %24 : vector<1x128xf32>
    %cst_17 = arith.constant 1.000000e+00 : f32
    %26 = vector.broadcast %cst_17 : f32 to vector<1x128xf32>
    %27 = arith.addf %26, %25 : vector<1x128xf32>
    %28 = arith.divf %26, %27 : vector<1x128xf32>
    %c0_18 = arith.constant 0 : index
    %c0_19 = arith.constant 0 : index
    %29 = vector.load %arg8[%c0_18, %c0_19] : memref<1x128xf32, #tpu.memory_space<vmem>>, vector<1x128xf32>
    tpu.vector_store %arg8[%c0_18, %c0_19], %28 {strides = array<i32>} : memref<1x128xf32, #tpu.memory_space<vmem>>, vector<1x128xf32>,
    return
  }
  func.func @transform_0(%arg0: i32) -> (i32, i32) {
    %c0_i32 = arith.constant 0 : i32
    %c0_i32_0 = arith.constant 0 : i32
    return %c0_i32, %arg0 : i32, i32
  }
  func.func @transform_1(%arg0: i32) -> (i32, i32) {
    %c0_i32 = arith.constant 0 : i32
    %c0_i32_0 = arith.constant 0 : i32
    %c0_i32_1 = arith.constant 0 : i32
    return %c0_i32, %c0_i32_0 : i32, i32
  }
  func.func @transform_2(%arg0: i32) -> (i32, i32) {
    %c0_i32 = arith.constant 0 : i32
    %c0_i32_0 = arith.constant 0 : i32
    %c0_i32_1 = arith.constant 0 : i32
    return %c0_i32, %c0_i32_0 : i32, i32
  }
  func.func @transform_3(%arg0: i32) -> (i32, i32) {
    %c0_i32 = arith.constant 0 : i32
    %c0_i32_0 = arith.constant 0 : i32
    %c0_i32_1 = arith.constant 0 : i32
    return %c0_i32, %c0_i32_0 : i32, i32
  }
  func.func @transform_4(%arg0: i32) -> (i32, i32) {
    %c0_i32 = arith.constant 0 : i32
    %c0_i32_0 = arith.constant 0 : i32
    %c0_i32_1 = arith.constant 0 : i32
    return %c0_i32, %c0_i32_0 : i32, i32
  }
  func.func @transform_5(%arg0: i32) -> (i32, i32) {
    %c0_i32 = arith.constant 0 : i32
    %c0_i32_0 = arith.constant 0 : i32
    %c0_i32_1 = arith.constant 0 : i32
    return %c0_i32, %c0_i32_0 : i32, i32
  }
  func.func @transform_6(%arg0: i32) -> (i32, i32) {
    %c0_i32 = arith.constant 0 : i32
    %c0_i32_0 = arith.constant 0 : i32
    %c0_i32_1 = arith.constant 0 : i32
    return %c0_i32, %c0_i32_0 : i32, i32
  }
  func.func @transform_7(%arg0: i32) -> (i32, i32) {
    %c0_i32 = arith.constant 0 : i32
    %c0_i32_0 = arith.constant 0 : i32
    return %c0_i32, %arg0 : i32, i32
  }
}

</mosaic_0001>

<llo_original>
// kernel: discriminator_forward.1
$region0: #{discriminator_forward.1}
  #allocation0 [shape = 'u32[]', space=smem, size = 0x4, offset = 0x4, fixed_abs, tag = 'smem constant byte address 0x4 - core index']
  #allocation1 [shape = 'u32[144,128]{1,0:T(1,128)}', space=vmem, size = 0x12000, scoped, tag = 'internal scratch']
  #allocation2 [shape = 'f32[1,1]{1,0:T(1,128)S(1)}', space=vmem, size = 0x200, scoped, tag = 'scoped memory for discriminator_forward.1']
  %s0 = inlined_call_operand.vmem [shape: bf16[128,128], index: 0, kind: input, shape index: {}]
  %s1 = inlined_call_operand.vmem [shape: bf16[128,128], index: 1, kind: input, shape index: {}]
  %s2 = inlined_call_operand.vmem [shape: f32[128,1], index: 2, kind: input, shape index: {}]
  %s3 = inlined_call_operand.vmem [shape: bf16[128,128], index: 3, kind: input, shape index: {}]
  %s4 = inlined_call_operand.vmem [shape: f32[128,1], index: 4, kind: input, shape index: {}]
  %s5 = inlined_call_operand.vmem [shape: f32[128,1], index: 5, kind: input, shape index: {}]
  %s6 = inlined_call_operand.<no memory space> [shape: f32[1,1], index: 6, kind: input, shape index: {}]
  %s7 = inlined_call_operand.vmem [shape: f32[1,128], index: 7, kind: output, shape index: {}]
  %s8 = sld [smem:[#allocation0]]
  $region38: #{discriminator_forward.1} parent=0
    _
  %s10 = ssub.s32 1, %s8
  %s11 = scalar_select 0, %s10, %s8
  %v12 = vstv %s6
  %13 = vst [vmem:[#allocation2] sm:$0x1] %v12
  // Predicated region
  $region2: #{discriminator_forward.1} parent=0 // pred_check
    _
  $region3: #{discriminator_forward.1} parent=0 // pred_check_branch
    %15 = sbr.rel (0) target = $region5
  $region4: #{discriminator_forward.1} parent=0 // pred_region
    _
  $region5: #{discriminator_forward.1} parent=0 // pred_fallthru
    _
  // Predicated region
  $region6: #{discriminator_forward.1} parent=0 // pred_check
    _
  $region7: #{discriminator_forward.1} parent=0 // pred_check_branch
    %17 = sbr.rel (0) target = $region9
  $region8: #{discriminator_forward.1} parent=0 // pred_region
    _
  $region9: #{discriminator_forward.1} parent=0 // pred_fallthru
    _
  // Predicated region
  $region10: #{discriminator_forward.1} parent=0 // pred_check
    _
  $region11: #{discriminator_forward.1} parent=0 // pred_check_branch
    %19 = sbr.rel (0) target = $region13
  $region12: #{discriminator_forward.1} parent=0 // pred_region
    _
  $region13: #{discriminator_forward.1} parent=0 // pred_fallthru
    _
  // Predicated region
  $region14: #{discriminator_forward.1} parent=0 // pred_check
    _
  $region15: #{discriminator_forward.1} parent=0 // pred_check_branch
    %21 = sbr.rel (0) target = $region17
  $region16: #{discriminator_forward.1} parent=0 // pred_region
    _
  $region17: #{discriminator_forward.1} parent=0 // pred_fallthru
    _
  // Predicated region
  $region18: #{discriminator_forward.1} parent=0 // pred_check
    _
  $region19: #{discriminator_forward.1} parent=0 // pred_check_branch
    %23 = sbr.rel (0) target = $region21
  $region20: #{discriminator_forward.1} parent=0 // pred_region
    _
  $region21: #{discriminator_forward.1} parent=0 // pred_fallthru
    _
  // Predicated region
  $region22: #{discriminator_forward.1} parent=0 // pred_check
    _
  $region23: #{discriminator_forward.1} parent=0 // pred_check_branch
    %25 = sbr.rel (0) target = $region25
  $region24: #{discriminator_forward.1} parent=0 // pred_region
    _
  $region25: #{discriminator_forward.1} parent=0 // pred_fallthru
    _
  // Predicated region
  $region26: #{discriminator_forward.1} parent=0 // pred_check
    _
  $region27: #{discriminator_forward.1} parent=0 // pred_check_branch
    %27 = sbr.rel (0) target = $region29
  $region28: #{discriminator_forward.1} parent=0 // pred_region
    _
  $region29: #{discriminator_forward.1} parent=0 // pred_fallthru
    _
  %v29 = vld [vmem:[%s0] sm:$0xf]
  %v30 = vld [vmem:[%s0 + $0x4] sm:$0xf]
  %v31 = vld [vmem:[%s0 + $0x8] sm:$0xf]
  %v32 = vld [vmem:[%s0 + $0xc] sm:$0xf]
  %v33 = vld [vmem:[%s0 + $0x10] sm:$0xf]
  %v34 = vld [vmem:[%s0 + $0x14] sm:$0xf]
  %v35 = vld [vmem:[%s0 + $0x18] sm:$0xf]
  %v36 = vld [vmem:[%s0 + $0x1c] sm:$0xf]
  %v37 = vld [vmem:[%s0 + $0x20] sm:$0xf]
  %v38 = vld [vmem:[%s0 + $0x24] sm:$0xf]
  %v39 = vld [vmem:[%s0 + $0x28] sm:$0xf]
  %v40 = vld [vmem:[%s0 + $0x2c] sm:$0xf]
  %v41 = vld [vmem:[%s0 + $0x30] sm:$0xf]
  %v42 = vld [vmem:[%s0 + $0x34] sm:$0xf]
  %v43 = vld [vmem:[%s0 + $0x38] sm:$0xf]
  %v44 = vld [vmem:[%s0 + $0x3c] sm:$0xf]
  %v45 = vld [vmem:[%s1] sm:$0xf]
  %v46 = vld [vmem:[%s1 + $0x4] sm:$0xf]
  %v47 = vld [vmem:[%s1 + $0x8] sm:$0xf]
  %v48 = vld [vmem:[%s1 + $0xc] sm:$0xf]
  %v49 = vld [vmem:[%s1 + $0x10] sm:$0xf]
  %v50 = vld [vmem:[%s1 + $0x14] sm:$0xf]
  %v51 = vld [vmem:[%s1 + $0x18] sm:$0xf]
  %v52 = vld [vmem:[%s1 + $0x1c] sm:$0xf]
  %v53 = vld [vmem:[%s1 + $0x20] sm:$0xf]
  %v54 = vld [vmem:[%s1 + $0x24] sm:$0xf]
  %v55 = vld [vmem:[%s1 + $0x28] sm:$0xf]
  %v56 = vld [vmem:[%s1 + $0x2c] sm:$0xf]
  %v57 = vld [vmem:[%s1 + $0x30] sm:$0xf]
  %v58 = vld [vmem:[%s1 + $0x34] sm:$0xf]
  %v59 = vld [vmem:[%s1 + $0x38] sm:$0xf]
  %v60 = vld [vmem:[%s1 + $0x3c] sm:$0xf]
  %v61 = vld [vmem:[%s2] sm:$0xff]
  %v62 = vld [vmem:[%s2 + $0x8] sm:$0xff]
  %v63 = vld [vmem:[%s2 + $0x10] sm:$0xff]
  %v64 = vld [vmem:[%s2 + $0x18] sm:$0xff]
  %v65 = vld [vmem:[%s2 + $0x20] sm:$0xff]
  %v66 = vld [vmem:[%s2 + $0x28] sm:$0xff]
  %v67 = vld [vmem:[%s2 + $0x30] sm:$0xff]
  %v68 = vld [vmem:[%s2 + $0x38] sm:$0xff]
  %v69 = vld [vmem:[%s2 + $0x40] sm:$0xff]
  %v70 = vld [vmem:[%s2 + $0x48] sm:$0xff]
  %v71 = vld [vmem:[%s2 + $0x50] sm:$0xff]
  %v72 = vld [vmem:[%s2 + $0x58] sm:$0xff]
  %v73 = vld [vmem:[%s2 + $0x60] sm:$0xff]
  %v74 = vld [vmem:[%s2 + $0x68] sm:$0xff]
  %v75 = vld [vmem:[%s2 + $0x70] sm:$0xff]
  %v76 = vld [vmem:[%s2 + $0x78] sm:$0xff]
  %78 = vset.pattern.permute.xlu0 0
  %79 = vperm.xlu0 %78, %v61
  %v80 = vpop.permute.xlu0 %79
  %83 = vset.pattern.permute.xlu0 0
  %84 = vperm.xlu0 %83, %v62
  %v85 = vpop.permute.xlu0 %84
  %88 = vset.pattern.permute.xlu0 0
  %89 = vperm.xlu0 %88, %v63
  %v90 = vpop.permute.xlu0 %89
  %93 = vset.pattern.permute.xlu0 0
  %94 = vperm.xlu0 %93, %v64
  %v95 = vpop.permute.xlu0 %94
  %98 = vset.pattern.permute.xlu0 0
  %99 = vperm.xlu0 %98, %v65
  %v100 = vpop.permute.xlu0 %99
  %103 = vset.pattern.permute.xlu0 0
  %104 = vperm.xlu0 %103, %v66
  %v105 = vpop.permute.xlu0 %104
  %108 = vset.pattern.permute.xlu0 0
  %109 = vperm.xlu0 %108, %v67
  %v110 = vpop.permute.xlu0 %109
  %113 = vset.pattern.permute.xlu0 0
  %114 = vperm.xlu0 %113, %v68
  %v115 = vpop.permute.xlu0 %114
  %118 = vset.pattern.permute.xlu0 0
  %119 = vperm.xlu0 %118, %v69
  %v120 = vpop.permute.xlu0 %119
  %123 = vset.pattern.permute.xlu0 0
  %124 = vperm.xlu0 %123, %v70
  %v125 = vpop.permute.xlu0 %124
  %128 = vset.pattern.permute.xlu0 0
  %129 = vperm.xlu0 %128, %v71
  %v130 = vpop.permute.xlu0 %129
  %133 = vset.pattern.permute.xlu0 0
  %134 = vperm.xlu0 %133, %v72
  %v135 = vpop.permute.xlu0 %134
  %138 = vset.pattern.permute.xlu0 0
  %139 = vperm.xlu0 %138, %v73
  %v140 = vpop.permute.xlu0 %139
  %143 = vset.pattern.permute.xlu0 0
  %144 = vperm.xlu0 %143, %v74
  %v145 = vpop.permute.xlu0 %144
  %148 = vset.pattern.permute.xlu0 0
  %149 = vperm.xlu0 %148, %v75
  %v150 = vpop.permute.xlu0 %149
  %153 = vset.pattern.permute.xlu0 0
  %154 = vperm.xlu0 %153, %v76
  %v155 = vpop.permute.xlu0 %154
  %v173 = vunpack.c.l.b16 %v45
  %v174 = vunpack.c.l.b16 %v46
  %v175 = vunpack.c.l.b16 %v47
  %v176 = vunpack.c.l.b16 %v48
  %v177 = vunpack.c.l.b16 %v49
  %v178 = vunpack.c.l.b16 %v50
  %v179 = vunpack.c.l.b16 %v51
  %v180 = vunpack.c.l.b16 %v52
  %v181 = vunpack.c.l.b16 %v53
  %v182 = vunpack.c.l.b16 %v54
  %v183 = vunpack.c.l.b16 %v55
  %v184 = vunpack.c.l.b16 %v56
  %v185 = vunpack.c.l.b16 %v57
  %v186 = vunpack.c.l.b16 %v58
  %v187 = vunpack.c.l.b16 %v59
  %v188 = vunpack.c.l.b16 %v60
  %v189 = vpack.c.b16 %v174, %v173
  %v190 = vpack.c.b16 %v176, %v175
  %v191 = vpack.c.b16 %v178, %v177
  %v192 = vpack.c.b16 %v180, %v179
  %v193 = vpack.c.b16 %v182, %v181
  %v194 = vpack.c.b16 %v184, %v183
  %v195 = vpack.c.b16 %v186, %v185
  %v196 = vpack.c.b16 %v188, %v187
  %v221 = vunpack.c.l.b16 %v29
  %v222 = vunpack.c.l.b16 %v30
  %v223 = vunpack.c.l.b16 %v31
  %v224 = vunpack.c.l.b16 %v32
  %v225 = vunpack.c.l.b16 %v33
  %v226 = vunpack.c.l.b16 %v34
  %v227 = vunpack.c.l.b16 %v35
  %v228 = vunpack.c.l.b16 %v36
  %v229 = vunpack.c.l.b16 %v37
  %v230 = vunpack.c.l.b16 %v38
  %v231 = vunpack.c.l.b16 %v39
  %v232 = vunpack.c.l.b16 %v40
  %v233 = vunpack.c.l.b16 %v41
  %v234 = vunpack.c.l.b16 %v42
  %v235 = vunpack.c.l.b16 %v43
  %v236 = vunpack.c.l.b16 %v44
  %v237 = vpack.c.b16 %v222, %v221
  %v238 = vpack.c.b16 %v224, %v223
  %v239 = vpack.c.b16 %v226, %v225
  %v240 = vpack.c.b16 %v228, %v227
  %v241 = vpack.c.b16 %v230, %v229
  %v242 = vpack.c.b16 %v232, %v231
  %v243 = vpack.c.b16 %v234, %v233
  %v244 = vpack.c.b16 %v236, %v235
  %253 = vmatprep.subr.bf16.mxu0 0
  %254 = vmatpush1.bf16.msra.mxu0 %v237
  %255 = vmatprep.subr.bf16.mxu0 0
  %256 = vmatpush1.bf16.msra.mxu0 %v238
  %257 = vmatprep.subr.bf16.mxu0 0
  %258 = vmatpush1.bf16.msra.mxu0 %v239
  %259 = vmatprep.subr.bf16.mxu0 0
  %260 = vmatpush1.bf16.msra.mxu0 %v240
  %261 = vmatprep.subr.bf16.mxu0 0
  %262 = vmatpush1.bf16.msra.mxu0 %v241
  %263 = vmatprep.subr.bf16.mxu0 0
  %264 = vmatpush1.bf16.msra.mxu0 %v242
  %265 = vmatprep.subr.bf16.mxu0 0
  %266 = vmatpush1.bf16.msra.mxu0 %v243
  %267 = vmatprep.subr.bf16.mxu0 0
  %268 = vmatpush1.bf16.msra.mxu0 %v244
  %269 = vmatprep.subr.bf16.mxu0 0
  %270 = vmatpush1.bf16.msra.mxu0 0
  %271 = vmatprep.subr.bf16.mxu0 0
  %272 = vmatpush1.bf16.msra.mxu0 0
  %273 = vmatprep.subr.bf16.mxu0 0
  %274 = vmatpush1.bf16.msra.mxu0 0
  %275 = vmatprep.subr.bf16.mxu0 0
  %276 = vmatpush1.bf16.msra.mxu0 0
  %277 = vmatprep.subr.bf16.mxu0 0
  %278 = vmatpush1.bf16.msra.mxu0 0
  %279 = vmatprep.subr.bf16.mxu0 0
  %280 = vmatpush1.bf16.msra.mxu0 0
  %281 = vmatprep.subr.bf16.mxu0 0
  %282 = vmatpush1.bf16.msra.mxu0 0
  %283 = vmatprep.subr.bf16.mxu0 0
  %284 = vmatpush1.bf16.msra.mxu0 0
  %285 = vmatprep.mubr.bf16.mxu0 0
  %286 = vmatmul.mubr.bf16.gmra.mrb[0].mxu0 %v189
  %v287 = vpop.f32.mrb[0].mxu0
  %v288 = vadd.f32 %v80, %v287
  %v289 = vpop.f32.mrb[0].mxu0
  %v290 = vpop.f32.mrb[0].mxu0
  %v291 = vadd.f32 %v85, %v290
  %v292 = vpop.f32.mrb[0].mxu0
  %293 = vmatprep.mubr.bf16.mxu0 0
  %294 = vmatmul.mubr.bf16.gmra.mrb[0].mxu0 %v190
  %v295 = vpop.f32.mrb[0].mxu0
  %v296 = vadd.f32 %v90, %v295
  %v297 = vpop.f32.mrb[0].mxu0
  %v298 = vpop.f32.mrb[0].mxu0
  %v299 = vadd.f32 %v95, %v298
  %v300 = vpop.f32.mrb[0].mxu0
  %301 = vmatprep.mubr.bf16.mxu0 0
  %302 = vmatmul.mubr.bf16.gmra.mrb[0].mxu0 %v191
  %v303 = vpop.f32.mrb[0].mxu0
  %v304 = vadd.f32 %v100, %v303
  %v305 = vpop.f32.mrb[0].mxu0
  %v306 = vpop.f32.mrb[0].mxu0
  %v307 = vadd.f32 %v105, %v306
  %v308 = vpop.f32.mrb[0].mxu0
  %309 = vmatprep.mubr.bf16.mxu0 0
  %310 = vmatmul.mubr.bf16.gmra.mrb[0].mxu0 %v192
  %v311 = vpop.f32.mrb[0].mxu0
  %v312 = vadd.f32 %v110, %v311
  %v313 = vpop.f32.mrb[0].mxu0
  %v314 = vpop.f32.mrb[0].mxu0
  %v315 = vadd.f32 %v115, %v314
  %v316 = vpop.f32.mrb[0].mxu0
  %317 = vmatprep.mubr.bf16.mxu0 0
  %318 = vmatmul.mubr.bf16.gmra.mrb[0].mxu0 %v193
  %v319 = vpop.f32.mrb[0].mxu0
  %v320 = vadd.f32 %v120, %v319
  %v321 = vpop.f32.mrb[0].mxu0
  %v322 = vpop.f32.mrb[0].mxu0
  %v323 = vadd.f32 %v125, %v322
  %v324 = vpop.f32.mrb[0].mxu0
  %325 = vmatprep.mubr.bf16.mxu0 0
  %326 = vmatmul.mubr.bf16.gmra.mrb[0].mxu0 %v194
  %v327 = vpop.f32.mrb[0].mxu0
  %v328 = vadd.f32 %v130, %v327
  %v329 = vpop.f32.mrb[0].mxu0
  %v330 = vpop.f32.mrb[0].mxu0
  %v331 = vadd.f32 %v135, %v330
  %v332 = vpop.f32.mrb[0].mxu0
  %333 = vmatprep.mubr.bf16.mxu0 0
  %334 = vmatmul.mubr.bf16.gmra.mrb[0].mxu0 %v195
  %v335 = vpop.f32.mrb[0].mxu0
  %v336 = vadd.f32 %v140, %v335
  %v337 = vpop.f32.mrb[0].mxu0
  %v338 = vpop.f32.mrb[0].mxu0
  %v339 = vadd.f32 %v145, %v338
  %v340 = vpop.f32.mrb[0].mxu0
  %341 = vmatprep.mubr.bf16.mxu0 0
  %342 = vmatmul.mubr.bf16.gmra.mrb[0].mxu0 %v196
  %v343 = vpop.f32.mrb[0].mxu0
  %v344 = vadd.f32 %v150, %v343
  %v345 = vpop.f32.mrb[0].mxu0
  %v346 = vpop.f32.mrb[0].mxu0
  %v347 = vadd.f32 %v155, %v346
  %v348 = vpop.f32.mrb[0].mxu0
  %349 = vdwg.mxu0
  %v350 = vmax.f32 %v288, 0.0
  %v351 = vmax.f32 %v291, 0.0
  %v352 = vmax.f32 %v296, 0.0
  %v353 = vmax.f32 %v299, 0.0
  %v354 = vmax.f32 %v304, 0.0
  %v355 = vmax.f32 %v307, 0.0
  %v356 = vmax.f32 %v312, 0.0
  %v357 = vmax.f32 %v315, 0.0
  %v358 = vmax.f32 %v320, 0.0
  %v359 = vmax.f32 %v323, 0.0
  %v360 = vmax.f32 %v328, 0.0
  %v361 = vmax.f32 %v331, 0.0
  %v362 = vmax.f32 %v336, 0.0
  %v363 = vmax.f32 %v339, 0.0
  %v364 = vmax.f32 %v344, 0.0
  %v365 = vmax.f32 %v347, 0.0
  %v366 = vld [vmem:[%s3] sm:$0xf]
  %v367 = vld [vmem:[%s3 + $0x4] sm:$0xf]
  %v368 = vld [vmem:[%s3 + $0x8] sm:$0xf]
  %v369 = vld [vmem:[%s3 + $0xc] sm:$0xf]
  %v370 = vld [vmem:[%s3 + $0x10] sm:$0xf]
  %v371 = vld [vmem:[%s3 + $0x14] sm:$0xf]
  %v372 = vld [vmem:[%s3 + $0x18] sm:$0xf]
  %v373 = vld [vmem:[%s3 + $0x1c] sm:$0xf]
  %v374 = vld [vmem:[%s3 + $0x20] sm:$0xf]
  %v375 = vld [vmem:[%s3 + $0x24] sm:$0xf]
  %v376 = vld [vmem:[%s3 + $0x28] sm:$0xf]
  %v377 = vld [vmem:[%s3 + $0x2c] sm:$0xf]
  %v378 = vld [vmem:[%s3 + $0x30] sm:$0xf]
  %v379 = vld [vmem:[%s3 + $0x34] sm:$0xf]
  %v380 = vld [vmem:[%s3 + $0x38] sm:$0xf]
  %v381 = vld [vmem:[%s3 + $0x3c] sm:$0xf]
  %v382 = vpack.c.bf16 %v351, %v350
  %v383 = vpack.c.bf16 %v353, %v352
  %v384 = vpack.c.bf16 %v355, %v354
  %v385 = vpack.c.bf16 %v357, %v356
  %v386 = vpack.c.bf16 %v359, %v358
  %v387 = vpack.c.bf16 %v361, %v360
  %v388 = vpack.c.bf16 %v363, %v362
  %v389 = vpack.c.bf16 %v365, %v364
  %v390 = vld [vmem:[%s4] sm:$0xff]
  %v391 = vld [vmem:[%s4 + $0x8] sm:$0xff]
  %v392 = vld [vmem:[%s4 + $0x10] sm:$0xff]
  %v393 = vld [vmem:[%s4 + $0x18] sm:$0xff]
  %v394 = vld [vmem:[%s4 + $0x20] sm:$0xff]
  %v395 = vld [vmem:[%s4 + $0x28] sm:$0xff]
  %v396 = vld [vmem:[%s4 + $0x30] sm:$0xff]
  %v397 = vld [vmem:[%s4 + $0x38] sm:$0xff]
  %v398 = vld [vmem:[%s4 + $0x40] sm:$0xff]
  %v399 = vld [vmem:[%s4 + $0x48] sm:$0xff]
  %v400 = vld [vmem:[%s4 + $0x50] sm:$0xff]
  %v401 = vld [vmem:[%s4 + $0x58] sm:$0xff]
  %v402 = vld [vmem:[%s4 + $0x60] sm:$0xff]
  %v403 = vld [vmem:[%s4 + $0x68] sm:$0xff]
  %v404 = vld [vmem:[%s4 + $0x70] sm:$0xff]
  %v405 = vld [vmem:[%s4 + $0x78] sm:$0xff]
  %407 = vset.pattern.permute.xlu0 0
  %408 = vperm.xlu0 %407, %v390
  %v409 = vpop.permute.xlu0 %408
  %412 = vset.pattern.permute.xlu0 0
  %413 = vperm.xlu0 %412, %v391
  %v414 = vpop.permute.xlu0 %413
  %417 = vset.pattern.permute.xlu0 0
  %418 = vperm.xlu0 %417, %v392
  %v419 = vpop.permute.xlu0 %418
  %422 = vset.pattern.permute.xlu0 0
  %423 = vperm.xlu0 %422, %v393
  %v424 = vpop.permute.xlu0 %423
  %427 = vset.pattern.permute.xlu0 0
  %428 = vperm.xlu0 %427, %v394
  %v429 = vpop.permute.xlu0 %428
  %432 = vset.pattern.permute.xlu0 0
  %433 = vperm.xlu0 %432, %v395
  %v434 = vpop.permute.xlu0 %433
  %437 = vset.pattern.permute.xlu0 0
  %438 = vperm.xlu0 %437, %v396
  %v439 = vpop.permute.xlu0 %438
  %442 = vset.pattern.permute.xlu0 0
  %443 = vperm.xlu0 %442, %v397
  %v444 = vpop.permute.xlu0 %443
  %447 = vset.pattern.permute.xlu0 0
  %448 = vperm.xlu0 %447, %v398
  %v449 = vpop.permute.xlu0 %448
  %452 = vset.pattern.permute.xlu0 0
  %453 = vperm.xlu0 %452, %v399
  %v454 = vpop.permute.xlu0 %453
  %457 = vset.pattern.permute.xlu0 0
  %458 = vperm.xlu0 %457, %v400
  %v459 = vpop.permute.xlu0 %458
  %462 = vset.pattern.permute.xlu0 0
  %463 = vperm.xlu0 %462, %v401
  %v464 = vpop.permute.xlu0 %463
  %467 = vset.pattern.permute.xlu0 0
  %468 = vperm.xlu0 %467, %v402
  %v469 = vpop.permute.xlu0 %468
  %472 = vset.pattern.permute.xlu0 0
  %473 = vperm.xlu0 %472, %v403
  %v474 = vpop.permute.xlu0 %473
  %477 = vset.pattern.permute.xlu0 0
  %478 = vperm.xlu0 %477, %v404
  %v479 = vpop.permute.xlu0 %478
  %482 = vset.pattern.permute.xlu0 0
  %483 = vperm.xlu0 %482, %v405
  %v484 = vpop.permute.xlu0 %483
  %v502 = vunpack.c.l.b16 %v366
  %v503 = vunpack.c.l.b16 %v367
  %v504 = vunpack.c.l.b16 %v368
  %v505 = vunpack.c.l.b16 %v369
  %v506 = vunpack.c.l.b16 %v370
  %v507 = vunpack.c.l.b16 %v371
  %v508 = vunpack.c.l.b16 %v372
  %v509 = vunpack.c.l.b16 %v373
  %v510 = vunpack.c.l.b16 %v374
  %v511 = vunpack.c.l.b16 %v375
  %v512 = vunpack.c.l.b16 %v376
  %v513 = vunpack.c.l.b16 %v377
  %v514 = vunpack.c.l.b16 %v378
  %v515 = vunpack.c.l.b16 %v379
  %v516 = vunpack.c.l.b16 %v380
  %v517 = vunpack.c.l.b16 %v381
  %v518 = vpack.c.b16 %v503, %v502
  %v519 = vpack.c.b16 %v505, %v504
  %v520 = vpack.c.b16 %v507, %v506
  %v521 = vpack.c.b16 %v509, %v508
  %v522 = vpack.c.b16 %v511, %v510
  %v523 = vpack.c.b16 %v513, %v512
  %v524 = vpack.c.b16 %v515, %v514
  %v525 = vpack.c.b16 %v517, %v516
  %534 = vmatprep.subr.bf16.mxu0 0
  %535 = vmatpush1.bf16.msra.mxu0 %v382
  %536 = vmatprep.subr.bf16.mxu0 0
  %537 = vmatpush1.bf16.msra.mxu0 %v383
  %538 = vmatprep.subr.bf16.mxu0 0
  %539 = vmatpush1.bf16.msra.mxu0 %v384
  %540 = vmatprep.subr.bf16.mxu0 0
  %541 = vmatpush1.bf16.msra.mxu0 %v385
  %542 = vmatprep.subr.bf16.mxu0 0
  %543 = vmatpush1.bf16.msra.mxu0 %v386
  %544 = vmatprep.subr.bf16.mxu0 0
  %545 = vmatpush1.bf16.msra.mxu0 %v387
  %546 = vmatprep.subr.bf16.mxu0 0
  %547 = vmatpush1.bf16.msra.mxu0 %v388
  %548 = vmatprep.subr.bf16.mxu0 0
  %549 = vmatpush1.bf16.msra.mxu0 %v389
  %550 = vmatprep.subr.bf16.mxu0 0
  %551 = vmatpush1.bf16.msra.mxu0 0
  %552 = vmatprep.subr.bf16.mxu0 0
  %553 = vmatpush1.bf16.msra.mxu0 0
  %554 = vmatprep.subr.bf16.mxu0 0
  %555 = vmatpush1.bf16.msra.mxu0 0
  %556 = vmatprep.subr.bf16.mxu0 0
  %557 = vmatpush1.bf16.msra.mxu0 0
  %558 = vmatprep.subr.bf16.mxu0 0
  %559 = vmatpush1.bf16.msra.mxu0 0
  %560 = vmatprep.subr.bf16.mxu0 0
  %561 = vmatpush1.bf16.msra.mxu0 0
  %562 = vmatprep.subr.bf16.mxu0 0
  %563 = vmatpush1.bf16.msra.mxu0 0
  %564 = vmatprep.subr.bf16.mxu0 0
  %565 = vmatpush1.bf16.msra.mxu0 0
  %566 = vmatprep.mubr.bf16.mxu0 0
  %567 = vmatmul.mubr.bf16.gmra.mrb[0].mxu0 %v518
  %v568 = vpop.f32.mrb[0].mxu0
  %v569 = vadd.f32 %v409, %v568
  %v570 = vpop.f32.mrb[0].mxu0
  %v571 = vpop.f32.mrb[0].mxu0
  %v572 = vadd.f32 %v414, %v571
  %v573 = vpop.f32.mrb[0].mxu0
  %574 = vmatprep.mubr.bf16.mxu0 0
  %575 = vmatmul.mubr.bf16.gmra.mrb[0].mxu0 %v519
  %v576 = vpop.f32.mrb[0].mxu0
  %v577 = vadd.f32 %v419, %v576
  %v578 = vpop.f32.mrb[0].mxu0
  %v579 = vpop.f32.mrb[0].mxu0
  %v580 = vadd.f32 %v424, %v579
  %v581 = vpop.f32.mrb[0].mxu0
  %582 = vmatprep.mubr.bf16.mxu0 0
  %583 = vmatmul.mubr.bf16.gmra.mrb[0].mxu0 %v520
  %v584 = vpop.f32.mrb[0].mxu0
  %v585 = vadd.f32 %v429, %v584
  %v586 = vpop.f32.mrb[0].mxu0
  %v587 = vpop.f32.mrb[0].mxu0
  %v588 = vadd.f32 %v434, %v587
  %v589 = vpop.f32.mrb[0].mxu0
  %590 = vmatprep.mubr.bf16.mxu0 0
  %591 = vmatmul.mubr.bf16.gmra.mrb[0].mxu0 %v521
  %v592 = vpop.f32.mrb[0].mxu0
  %v593 = vadd.f32 %v439, %v592
  %v594 = vpop.f32.mrb[0].mxu0
  %v595 = vpop.f32.mrb[0].mxu0
  %v596 = vadd.f32 %v444, %v595
  %v597 = vpop.f32.mrb[0].mxu0
  %598 = vmatprep.mubr.bf16.mxu0 0
  %599 = vmatmul.mubr.bf16.gmra.mrb[0].mxu0 %v522
  %v600 = vpop.f32.mrb[0].mxu0
  %v601 = vadd.f32 %v449, %v600
  %v602 = vpop.f32.mrb[0].mxu0
  %v603 = vpop.f32.mrb[0].mxu0
  %v604 = vadd.f32 %v454, %v603
  %v605 = vpop.f32.mrb[0].mxu0
  %606 = vmatprep.mubr.bf16.mxu0 0
  %607 = vmatmul.mubr.bf16.gmra.mrb[0].mxu0 %v523
  %v608 = vpop.f32.mrb[0].mxu0
  %v609 = vadd.f32 %v459, %v608
  %v610 = vpop.f32.mrb[0].mxu0
  %v611 = vpop.f32.mrb[0].mxu0
  %v612 = vadd.f32 %v464, %v611
  %v613 = vpop.f32.mrb[0].mxu0
  %614 = vmatprep.mubr.bf16.mxu0 0
  %615 = vmatmul.mubr.bf16.gmra.mrb[0].mxu0 %v524
  %v616 = vpop.f32.mrb[0].mxu0
  %v617 = vadd.f32 %v469, %v616
  %v618 = vpop.f32.mrb[0].mxu0
  %v619 = vpop.f32.mrb[0].mxu0
  %v620 = vadd.f32 %v474, %v619
  %v621 = vpop.f32.mrb[0].mxu0
  %622 = vmatprep.mubr.bf16.mxu0 0
  %623 = vmatmul.mubr.bf16.gmra.mrb[0].mxu0 %v525
  %v624 = vpop.f32.mrb[0].mxu0
  %v625 = vadd.f32 %v479, %v624
  %v626 = vpop.f32.mrb[0].mxu0
  %v627 = vpop.f32.mrb[0].mxu0
  %v628 = vadd.f32 %v484, %v627
  %v629 = vpop.f32.mrb[0].mxu0
  %630 = vdwg.mxu0
  %v631 = vmax.f32 %v569, 0.0
  %v632 = vmax.f32 %v572, 0.0
  %v633 = vmax.f32 %v577, 0.0
  %v634 = vmax.f32 %v580, 0.0
  %v635 = vmax.f32 %v585, 0.0
  %v636 = vmax.f32 %v588, 0.0
  %v637 = vmax.f32 %v593, 0.0
  %v638 = vmax.f32 %v596, 0.0
  %v639 = vmax.f32 %v601, 0.0
  %v640 = vmax.f32 %v604, 0.0
  %v641 = vmax.f32 %v609, 0.0
  %v642 = vmax.f32 %v612, 0.0
  %v643 = vmax.f32 %v617, 0.0
  %v644 = vmax.f32 %v620, 0.0
  %v645 = vmax.f32 %v625, 0.0
  %v646 = vmax.f32 %v628, 0.0
  %v647 = vld [vmem:[%s5] sm:$0xff]
  %v648 = vld [vmem:[%s5 + $0x8] sm:$0xff]
  %v649 = vld [vmem:[%s5 + $0x10] sm:$0xff]
  %v650 = vld [vmem:[%s5 + $0x18] sm:$0xff]
  %v651 = vld [vmem:[%s5 + $0x20] sm:$0xff]
  %v652 = vld [vmem:[%s5 + $0x28] sm:$0xff]
  %v653 = vld [vmem:[%s5 + $0x30] sm:$0xff]
  %v654 = vld [vmem:[%s5 + $0x38] sm:$0xff]
  %v655 = vld [vmem:[%s5 + $0x40] sm:$0xff]
  %v656 = vld [vmem:[%s5 + $0x48] sm:$0xff]
  %v657 = vld [vmem:[%s5 + $0x50] sm:$0xff]
  %v658 = vld [vmem:[%s5 + $0x58] sm:$0xff]
  %v659 = vld [vmem:[%s5 + $0x60] sm:$0xff]
  %v660 = vld [vmem:[%s5 + $0x68] sm:$0xff]
  %v661 = vld [vmem:[%s5 + $0x70] sm:$0xff]
  %v662 = vld [vmem:[%s5 + $0x78] sm:$0xff]
  %664 = vset.pattern.permute.xlu0 0
  %665 = vperm.xlu0 %664, %v647
  %v666 = vpop.permute.xlu0 %665
  %669 = vset.pattern.permute.xlu0 0
  %670 = vperm.xlu0 %669, %v648
  %v671 = vpop.permute.xlu0 %670
  %674 = vset.pattern.permute.xlu0 0
  %675 = vperm.xlu0 %674, %v649
  %v676 = vpop.permute.xlu0 %675
  %679 = vset.pattern.permute.xlu0 0
  %680 = vperm.xlu0 %679, %v650
  %v681 = vpop.permute.xlu0 %680
  %684 = vset.pattern.permute.xlu0 0
  %685 = vperm.xlu0 %684, %v651
  %v686 = vpop.permute.xlu0 %685
  %689 = vset.pattern.permute.xlu0 0
  %690 = vperm.xlu0 %689, %v652
  %v691 = vpop.permute.xlu0 %690
  %694 = vset.pattern.permute.xlu0 0
  %695 = vperm.xlu0 %694, %v653
  %v696 = vpop.permute.xlu0 %695
  %699 = vset.pattern.permute.xlu0 0
  %700 = vperm.xlu0 %699, %v654
  %v701 = vpop.permute.xlu0 %700
  %704 = vset.pattern.permute.xlu0 0
  %705 = vperm.xlu0 %704, %v655
  %v706 = vpop.permute.xlu0 %705
  %709 = vset.pattern.permute.xlu0 0
  %710 = vperm.xlu0 %709, %v656
  %v711 = vpop.permute.xlu0 %710
  %714 = vset.pattern.permute.xlu0 0
  %715 = vperm.xlu0 %714, %v657
  %v716 = vpop.permute.xlu0 %715
  %719 = vset.pattern.permute.xlu0 0
  %720 = vperm.xlu0 %719, %v658
  %v721 = vpop.permute.xlu0 %720
  %724 = vset.pattern.permute.xlu0 0
  %725 = vperm.xlu0 %724, %v659
  %v726 = vpop.permute.xlu0 %725
  %729 = vset.pattern.permute.xlu0 0
  %730 = vperm.xlu0 %729, %v660
  %v731 = vpop.permute.xlu0 %730
  %734 = vset.pattern.permute.xlu0 0
  %735 = vperm.xlu0 %734, %v661
  %v736 = vpop.permute.xlu0 %735
  %739 = vset.pattern.permute.xlu0 0
  %740 = vperm.xlu0 %739, %v662
  %v741 = vpop.permute.xlu0 %740
  %v743 = vmul.f32 %v631, %v666
  %v744 = vmul.f32 %v632, %v671
  %v745 = vmul.f32 %v633, %v676
  %v746 = vmul.f32 %v634, %v681
  %v747 = vmul.f32 %v635, %v686
  %v748 = vmul.f32 %v636, %v691
  %v749 = vmul.f32 %v637, %v696
  %v750 = vmul.f32 %v638, %v701
  %v751 = vmul.f32 %v639, %v706
  %v752 = vmul.f32 %v640, %v711
  %v753 = vmul.f32 %v641, %v716
  %v754 = vmul.f32 %v642, %v721
  %v755 = vmul.f32 %v643, %v726
  %v756 = vmul.f32 %v644, %v731
  %v757 = vmul.f32 %v645, %v736
  %v758 = vmul.f32 %v646, %v741
  %v759 = vadd.f32 %v743, %v744
  %v760 = vadd.f32 %v759, %v745
  %v761 = vadd.f32 %v760, %v746
  %v762 = vadd.f32 %v761, %v747
  %v763 = vadd.f32 %v762, %v748
  %v764 = vadd.f32 %v763, %v749
  %v765 = vadd.f32 %v764, %v750
  %v766 = vadd.f32 %v765, %v751
  %v767 = vadd.f32 %v766, %v752
  %v768 = vadd.f32 %v767, %v753
  %v769 = vadd.f32 %v768, %v754
  %v770 = vadd.f32 %v769, %v755
  %v771 = vadd.f32 %v770, %v756
  %v772 = vadd.f32 %v771, %v757
  %v773 = vadd.f32 %v772, %v758
  %v774 = vrot.slane %v773, 4
  %v775 = vadd.f32 %v773, %v774
  %v776 = vrot.slane %v775, 2
  %v777 = vadd.f32 %v775, %v776
  %v778 = vrot.slane %v777, 1
  %v779 = vadd.f32 %v777, %v778
  %v780 = vld [vmem:[#allocation2] sm:$0x1]
  %782 = vset.pattern.permute.xlu0 0
  %783 = vperm.xlu0 %782, %v780
  %v784 = vpop.permute.xlu0 %783
  %v786 = vlaneseq
  %v787 = vshrl.u32 %v786, 7
  %v788 = vsub.s32 0, %v787
  %v789 = vrot.slane %v784, %v788
  %v790 = vadd.f32 %v779, %v789
  %v791 = vxor.u32 %v790, 2147483648
  %v792 = vmul.f32 %v791, 1.442695
  %v793 = vpow.pop %v792
  %v794 = vadd.f32 %v793, 1.0
  %v795 = vrcp.pop %v794
  %v796 = vmul.f32 1.0, %v795
  %797 = vst [vmem:[%s7] sm:$0x1] %v796
  // Predicated region
  $region30: #{discriminator_forward.1} parent=0 // pred_check
    _
  $region31: #{discriminator_forward.1} parent=0 // pred_check_branch
    %799 = sbr.rel (0) target = $region33
  $region32: #{discriminator_forward.1} parent=0 // pred_region
    _
  $region33: #{discriminator_forward.1} parent=0 // pred_fallthru
    _
  // Predicated region
  $region34: #{discriminator_forward.1} parent=0 // pred_check
    _
  $region35: #{discriminator_forward.1} parent=0 // pred_check_branch
    %801 = sbr.rel (0) target = $region37
  $region36: #{discriminator_forward.1} parent=0 // pred_region
    _
  $region37: #{discriminator_forward.1} parent=0 // pred_fallthru
    _

</llo_original>
